<compile_context>
chip_gen: v5e
topology: v5e:2x2
jax: 0.10.0
libtpu: 0.0.40
codegen_flags: <defaults>
</compile_context>

<pallas_src>
import functools

import jax
import jax.numpy as jnp
from jax.experimental import pallas as pl
from jax.experimental.pallas import tpu as pltpu


def _round_up(x, m):
    return ((x + m - 1) // m) * m


def mlp_kernel(x_ref,
               w1_ref, b1_ref,
               w2_ref, b2_ref,
               w3_ref, b3_ref,
               w4_ref, b4_ref,
               out_ref):
    """One (TM, tau) row-tile through fc1..fc4.

    x_ref   : (TM, tau)     f32 activations (rows = batch*2 coordinates)
    wN_ref  : (in, out)     bf16 weights (VMEM-resident across all grid steps)
    bN_ref  : (1, out)      f32 biases
    out_ref : (TM, out_dim) f32
    bf16 operands feed the MXU natively; accumulation is f32
    (preferred_element_type) and the bias+ReLU epilogue stays f32 on the VPU
    (v5e has no bf16 VALU, so this is also the portable choice).
    """
    x = x_ref[...].astype(jnp.bfloat16)

    h = jnp.dot(x, w1_ref[...], preferred_element_type=jnp.float32) + b1_ref[...]
    h = jnp.maximum(h, 0.0)

    h = jnp.dot(h.astype(jnp.bfloat16), w2_ref[...],
                preferred_element_type=jnp.float32) + b2_ref[...]
    h = jnp.maximum(h, 0.0)

    h = jnp.dot(h.astype(jnp.bfloat16), w3_ref[...],
                preferred_element_type=jnp.float32) + b3_ref[...]
    h = jnp.maximum(h, 0.0)

    o = jnp.dot(h.astype(jnp.bfloat16), w4_ref[...],
                preferred_element_type=jnp.float32) + b4_ref[...]
    # out_dim = 4 -> lane-sparse store; writeback bytes are tiny so this is
    # left in the natural layout (padding to 128 lanes would add 32x HBM
    # traffic plus an extra slice op).
    out_ref[...] = o.astype(out_ref.dtype)


def mlp_pallas(x_rows, params, *, tm):
    """x_rows: (M, tau) f32 with M a multiple of tm; returns (M, out_dim) f32."""
    (w1, b1, w2, b2, w3, b3, w4, b4) = params
    M, tau = x_rows.shape
    out_dim = w4.shape[1]
    grid = (M // tm,)

    def resident(a):
        # Same block index at every grid step -> DMA'd once, stays in VMEM.
        return pl.BlockSpec(a.shape, lambda i: (0, 0))

    return pl.pallas_call(
        mlp_kernel,
        out_shape=jax.ShapeDtypeStruct((M, out_dim), jnp.float32),
        grid=grid,
        in_specs=[
            pl.BlockSpec((tm, tau), lambda i: (i, 0)),      # streamed row tile
            resident(w1), resident(b1),
            resident(w2), resident(b2),
            resident(w3), resident(b3),
            resident(w4), resident(b4),
        ],
        out_specs=pl.BlockSpec((tm, out_dim), lambda i: (i, 0)),
        compiler_params=pltpu.CompilerParams(
            # Independent row tiles -> split across both TensorCores on v7x.
            dimension_semantics=("parallel",),
            # Resident bf16 weights (~0.27 MB) + double-buffered (tm, tau) /
            # (tm, out_dim) tiles; 32 MiB is safe even on v7x's 64 MiB VMEM.
            vmem_limit_bytes=32 * 1024 * 1024,
        ),
    )(x_rows, w1, b1, w2, b2, w3, b3, w4, b4)


@functools.partial(jax.jit, static_argnames=("pred_length", "tm"))
def mlp_forward(inputs, params, *, pred_length, tm=256):
    """Same semantics as MLP.forward: (B, tau, 2) -> (B, pred_length, 2).

    The permute(0,2,1) glue and the inverse permute are compiled into the same
    XLA program as the Pallas custom call, so the whole forward is a single
    dispatch; the heavy work (4x Linear + ReLU) is one Pallas kernel.
    """
    B, tau, C = inputs.shape
    M = B * C
    x = jnp.transpose(inputs, (0, 2, 1)).reshape(M, tau)   # rows = (b, c)

    # Pad row count to a tile multiple (tm capped for tiny batches so the
    # block shape stays valid: multiple of 8 sublanes).
    tm_eff = min(tm, _round_up(M, 8))
    m_pad = _round_up(M, tm_eff)
    if m_pad != M:
        x = jnp.pad(x, ((0, m_pad - M), (0, 0)))

    o = mlp_pallas(x, params, tm=tm_eff)                    # (m_pad, out_dim)
    o = o[:M].reshape(B, C, pred_length)
    return jnp.transpose(o, (0, 2, 1))                      # (B, pred_length, 2)


def init_params(key, feature_dim, out_dim, h1=256, h2=256, h3=256):
    """Deterministic synthetic init, f32 master copy.

    Weights stored as (in, out) so the kernel does x @ W — transpose of
    PyTorch's (out, in) storage but numerically identical to x @ W.T.
    """
    ks = jax.random.split(key, 8)

    def uinit(k, fan_in, shape):
        bound = 1.0 / jnp.sqrt(jnp.float32(fan_in))
        return jax.random.uniform(k, shape, jnp.float32, -bound, bound)

    w1 = uinit(ks[0], feature_dim, (feature_dim, h1)); b1 = uinit(ks[1], feature_dim, (1, h1))
    w2 = uinit(ks[2], h1, (h1, h2));                   b2 = uinit(ks[3], h1, (1, h2))
    w3 = uinit(ks[4], h2, (h2, h3));                   b3 = uinit(ks[5], h2, (1, h3))
    w4 = uinit(ks[6], h3, (h3, out_dim));              b4 = uinit(ks[7], h3, (1, out_dim))
    return (w1, b1, w2, b2, w3, b3, w4, b4)


def prepare_params(params_f32):
    """One-time cast of weight matrices to bf16 MXU operands (biases stay f32)."""
    (w1, b1, w2, b2, w3, b3, w4, b4) = params_f32
    c = lambda w: w.astype(jnp.bfloat16)
    return (c(w1), b1, c(w2), b2, c(w3), b3, c(w4), b4)


def mlp_reference(inputs, params_f32, *, bf16_matmuls):
    """Plain-JAX reference of the PyTorch forward (optionally bf16 operands)."""
    (w1, b1, w2, b2, w3, b3, w4, b4) = params_f32

    def mm(a, w):
        if bf16_matmuls:
            return jnp.dot(a.astype(jnp.bfloat16), w.astype(jnp.bfloat16),
                           preferred_element_type=jnp.float32)
        return jnp.dot(a, w, preferred_element_type=jnp.float32)

    x = jnp.transpose(inputs, (0, 2, 1))          # (B, 2, tau)
    h = jax.nn.relu(mm(x, w1) + b1)
    h = jax.nn.relu(mm(h, w2) + b2)
    h = jax.nn.relu(mm(h, w3) + b3)
    o = mm(h, w4) + b4                            # (B, 2, out_dim)
    return jnp.transpose(o, (0, 2, 1))            # (B, out_dim, 2)


if __name__ == "__main__":
    # MLPPredictor implies inputs of shape (batch, pred_tau, 2).
    batch = 2
    pred_tau = 8       # feature_dim
    pred_length = 4    # out_dim

    key = jax.random.PRNGKey(0)
    k_in, k_p, k_in2 = jax.random.split(key, 3)
    inputs = jax.random.normal(k_in, (batch, pred_tau, 2), jnp.float32)
    params_f32 = init_params(k_p, pred_tau, pred_length)
    params = prepare_params(params_f32)

    # Small-batch path (single grid step).
    out = mlp_forward(inputs, params, pred_length=pred_length)
    out = jax.block_until_ready(out)
    assert out.shape == (batch, pred_length, 2), out.shape

    ref_bf16 = mlp_reference(inputs, params_f32, bf16_matmuls=True)
    ref_f32 = mlp_reference(inputs, params_f32, bf16_matmuls=False)
    assert jnp.allclose(out, ref_bf16, atol=2e-3, rtol=2e-3), "mismatch vs bf16 reference"
    assert jnp.allclose(out, ref_f32, atol=5e-2, rtol=5e-2), "mismatch vs f32 reference"

    # Larger batch exercises the multi-tile gridded path (weights resident
    # across grid steps, row tiles at MXU granularity).
    inputs2 = jax.random.normal(k_in2, (192, pred_tau, 2), jnp.float32)
    out2 = jax.block_until_ready(mlp_forward(inputs2, params, pred_length=pred_length))
    ref2 = mlp_reference(inputs2, params_f32, bf16_matmuls=True)
    assert out2.shape == (192, pred_length, 2), out2.shape
    assert jnp.allclose(out2, ref2, atol=2e-3, rtol=2e-3), "mismatch vs reference (batched)"

    # TODO(synk): if this predictor runs in a per-step decode loop, keep the
    # bf16 weights resident across calls (cross-call prefetch / aliasing)
    # instead of re-feeding them through pallas_call each step.
    print("KERNEL_OK")
</pallas_src>

<mosaic_0001>
module attributes {stable_mosaic.version = 11 : i64} {
  func.func @mlp_kernel(%arg0: i32, %arg1: memref<8x8xf32, #tpu.memory_space<vmem>>, %arg2: memref<8x256xbf16, #tpu.memory_space<vmem>>, %arg3: memref<1x256xf32, #tpu.memory_space<vmem>>, %arg4: memref<256x256xbf16, #tpu.memory_space<vmem>>, %arg5: memref<1x256xf32, #tpu.memory_space<vmem>>, %arg6: memref<256x256xbf16, #tpu.memory_space<vmem>>, %arg7: memref<1x256xf32, #tpu.memory_space<vmem>>, %arg8: memref<256x4xbf16, #tpu.memory_space<vmem>>, %arg9: memref<1x4xf32, #tpu.memory_space<vmem>>, %arg10: memref<8x4xf32, #tpu.memory_space<vmem>>) attributes {dimension_semantics = [#tpu.dimension_semantics<parallel>], iteration_bounds = array<i64: 1>, scalar_prefetch = 0 : i64, scratch_operands = 0 : i64, tpu.core_type = #tpu.core_type<tc>, window_params = [{transform_indices = @transform_0, window_bounds = array<i64: 8, 8>}, {pipeline_mode = #tpu.pipeline_mode<synchronous>, transform_indices = @transform_1, window_bounds = array<i64: 8, 256>}, {pipeline_mode = #tpu.pipeline_mode<synchronous>, transform_indices = @transform_2, window_bounds = array<i64: 1, 256>}, {pipeline_mode = #tpu.pipeline_mode<synchronous>, transform_indices = @transform_3, window_bounds = array<i64: 256, 256>}, {pipeline_mode = #tpu.pipeline_mode<synchronous>, transform_indices = @transform_4, window_bounds = array<i64: 1, 256>}, {pipeline_mode = #tpu.pipeline_mode<synchronous>, transform_indices = @transform_5, window_bounds = array<i64: 256, 256>}, {pipeline_mode = #tpu.pipeline_mode<synchronous>, transform_indices = @transform_6, window_bounds = array<i64: 1, 256>}, {pipeline_mode = #tpu.pipeline_mode<synchronous>, transform_indices = @transform_7, window_bounds = array<i64: 256, 4>}, {pipeline_mode = #tpu.pipeline_mode<synchronous>, transform_indices = @transform_8, window_bounds = array<i64: 1, 4>}, {transform_indices = @transform_9, window_bounds = array<i64: 8, 4>}]} {
    %c0 = arith.constant 0 : index
    %c0_0 = arith.constant 0 : index
    %0 = vector.load %arg1[%c0, %c0_0] : memref<8x8xf32, #tpu.memory_space<vmem>>, vector<8x8xf32>
    %1 = arith.truncf %0 : vector<8x8xf32> to vector<8x8xbf16>
    %c0_1 = arith.constant 0 : index
    %c0_2 = arith.constant 0 : index
    %2 = vector.load %arg2[%c0_1, %c0_2] : memref<8x256xbf16, #tpu.memory_space<vmem>>, vector<8x256xbf16>
    %cst = arith.constant dense<0.000000e+00> : vector<8x256xf32>
    %3 = tpu.matmul %1, %2, %cst {dimension_numbers = #tpu.dot_dimension_numbers<[1], [0], [0], [1], [0, 0, 1, 1], [], []>} : vector<8x8xbf16>, vector<8x256xbf16>, vector<8x256xf32> -> vector<8x256xf32>
    %c0_3 = arith.constant 0 : index
    %c0_4 = arith.constant 0 : index
    %4 = vector.load %arg3[%c0_3, %c0_4] : memref<1x256xf32, #tpu.memory_space<vmem>>, vector<1x256xf32>
    %5 = vector.broadcast %4 : vector<1x256xf32> to vector<8x256xf32>
    %6 = arith.addf %3, %5 : vector<8x256xf32>
    %cst_5 = arith.constant 0.000000e+00 : f32
    %7 = vector.broadcast %cst_5 : f32 to vector<8x256xf32>
    %8 = arith.maximumf %6, %7 : vector<8x256xf32>
    %9 = arith.truncf %8 : vector<8x256xf32> to vector<8x256xbf16>
    %c0_6 = arith.constant 0 : index
    %c0_7 = arith.constant 0 : index
    %10 = vector.load %arg4[%c0_6, %c0_7] : memref<256x256xbf16, #tpu.memory_space<vmem>>, vector<256x256xbf16>
    %cst_8 = arith.constant dense<0.000000e+00> : vector<8x256xf32>
    %11 = tpu.matmul %9, %10, %cst_8 {dimension_numbers = #tpu.dot_dimension_numbers<[1], [0], [0], [1], [0, 0, 1, 1], [], []>} : vector<8x256xbf16>, vector<256x256xbf16>, vector<8x256xf32> -> vector<8x256xf32>
    %c0_9 = arith.constant 0 : index
    %c0_10 = arith.constant 0 : index
    %12 = vector.load %arg5[%c0_9, %c0_10] : memref<1x256xf32, #tpu.memory_space<vmem>>, vector<1x256xf32>
    %13 = vector.broadcast %12 : vector<1x256xf32> to vector<8x256xf32>
    %14 = arith.addf %11, %13 : vector<8x256xf32>
    %cst_11 = arith.constant 0.000000e+00 : f32
    %15 = vector.broadcast %cst_11 : f32 to vector<8x256xf32>
    %16 = arith.maximumf %14, %15 : vector<8x256xf32>
    %17 = arith.truncf %16 : vector<8x256xf32> to vector<8x256xbf16>
    %c0_12 = arith.constant 0 : index
    %c0_13 = arith.constant 0 : index
    %18 = vector.load %arg6[%c0_12, %c0_13] : memref<256x256xbf16, #tpu.memory_space<vmem>>, vector<256x256xbf16>
    %cst_14 = arith.constant dense<0.000000e+00> : vector<8x256xf32>
    %19 = tpu.matmul %17, %18, %cst_14 {dimension_numbers = #tpu.dot_dimension_numbers<[1], [0], [0], [1], [0, 0, 1, 1], [], []>} : vector<8x256xbf16>, vector<256x256xbf16>, vector<8x256xf32> -> vector<8x256xf32>
    %c0_15 = arith.constant 0 : index
    %c0_16 = arith.constant 0 : index
    %20 = vector.load %arg7[%c0_15, %c0_16] : memref<1x256xf32, #tpu.memory_space<vmem>>, vector<1x256xf32>
    %21 = vector.broadcast %20 : vector<1x256xf32> to vector<8x256xf32>
    %22 = arith.addf %19, %21 : vector<8x256xf32>
    %cst_17 = arith.constant 0.000000e+00 : f32
    %23 = vector.broadcast %cst_17 : f32 to vector<8x256xf32>
    %24 = arith.maximumf %22, %23 : vector<8x256xf32>
    %25 = arith.truncf %24 : vector<8x256xf32> to vector<8x256xbf16>
    %c0_18 = arith.constant 0 : index
    %c0_19 = arith.constant 0 : index
    %26 = vector.load %arg8[%c0_18, %c0_19] : memref<256x4xbf16, #tpu.memory_space<vmem>>, vector<256x4xbf16>
    %cst_20 = arith.constant dense<0.000000e+00> : vector<8x4xf32>
    %27 = tpu.matmul %25, %26, %cst_20 {dimension_numbers = #tpu.dot_dimension_numbers<[1], [0], [0], [1], [0, 0, 1, 1], [], []>} : vector<8x256xbf16>, vector<256x4xbf16>, vector<8x4xf32> -> vector<8x4xf32>
    %c0_21 = arith.constant 0 : index
    %c0_22 = arith.constant 0 : index
    %28 = vector.load %arg9[%c0_21, %c0_22] : memref<1x4xf32, #tpu.memory_space<vmem>>, vector<1x4xf32>
    %29 = vector.broadcast %28 : vector<1x4xf32> to vector<8x4xf32>
    %30 = arith.addf %27, %29 : vector<8x4xf32>
    %c0_23 = arith.constant 0 : index
    %c0_24 = arith.constant 0 : index
    %31 = vector.load %arg10[%c0_23, %c0_24] : memref<8x4xf32, #tpu.memory_space<vmem>>, vector<8x4xf32>
    tpu.vector_store %arg10[%c0_23, %c0_24], %30 {strides = array<i32>} : memref<8x4xf32, #tpu.memory_space<vmem>>, vector<8x4xf32>,
    return
  }
  func.func @transform_0(%arg0: i32) -> (i32, i32) {
    %c0_i32 = arith.constant 0 : i32
    %c0_i32_0 = arith.constant 0 : i32
    return %arg0, %c0_i32 : i32, i32
  }
  func.func @transform_1(%arg0: i32) -> (i32, i32) {
    %c0_i32 = arith.constant 0 : i32
    %c0_i32_0 = arith.constant 0 : i32
    %c0_i32_1 = arith.constant 0 : i32
    return %c0_i32, %c0_i32_0 : i32, i32
  }
  func.func @transform_2(%arg0: i32) -> (i32, i32) {
    %c0_i32 = arith.constant 0 : i32
    %c0_i32_0 = arith.constant 0 : i32
    %c0_i32_1 = arith.constant 0 : i32
    return %c0_i32, %c0_i32_0 : i32, i32
  }
  func.func @transform_3(%arg0: i32) -> (i32, i32) {
    %c0_i32 = arith.constant 0 : i32
    %c0_i32_0 = arith.constant 0 : i32
    %c0_i32_1 = arith.constant 0 : i32
    return %c0_i32, %c0_i32_0 : i32, i32
  }
  func.func @transform_4(%arg0: i32) -> (i32, i32) {
    %c0_i32 = arith.constant 0 : i32
    %c0_i32_0 = arith.constant 0 : i32
    %c0_i32_1 = arith.constant 0 : i32
    return %c0_i32, %c0_i32_0 : i32, i32
  }
  func.func @transform_5(%arg0: i32) -> (i32, i32) {
    %c0_i32 = arith.constant 0 : i32
    %c0_i32_0 = arith.constant 0 : i32
    %c0_i32_1 = arith.constant 0 : i32
    return %c0_i32, %c0_i32_0 : i32, i32
  }
  func.func @transform_6(%arg0: i32) -> (i32, i32) {
    %c0_i32 = arith.constant 0 : i32
    %c0_i32_0 = arith.constant 0 : i32
    %c0_i32_1 = arith.constant 0 : i32
    return %c0_i32, %c0_i32_0 : i32, i32
  }
  func.func @transform_7(%arg0: i32) -> (i32, i32) {
    %c0_i32 = arith.constant 0 : i32
    %c0_i32_0 = arith.constant 0 : i32
    %c0_i32_1 = arith.constant 0 : i32
    return %c0_i32, %c0_i32_0 : i32, i32
  }
  func.func @transform_8(%arg0: i32) -> (i32, i32) {
    %c0_i32 = arith.constant 0 : i32
    %c0_i32_0 = arith.constant 0 : i32
    %c0_i32_1 = arith.constant 0 : i32
    return %c0_i32, %c0_i32_0 : i32, i32
  }
  func.func @transform_9(%arg0: i32) -> (i32, i32) {
    %c0_i32 = arith.constant 0 : i32
    %c0_i32_0 = arith.constant 0 : i32
    return %arg0, %c0_i32 : i32, i32
  }
}

</mosaic_0001>

<llo_original>
// kernel: mlp_forward.1
$region0: #{mlp_forward.1}
  #allocation0 [shape = 'u32[]', space=smem, size = 0x4, offset = 0x4, fixed_abs, tag = 'smem constant byte address 0x4 - core index']
  #allocation1 [shape = 'u32[72,128]{1,0:T(1,128)}', space=vmem, size = 0x9000, scoped, tag = 'internal scratch']
  %s0 = inlined_call_operand.vmem [shape: f32[8,8], index: 0, kind: input, shape index: {}]
  %s1 = inlined_call_operand.vmem [shape: bf16[8,256], index: 1, kind: input, shape index: {}]
  %s2 = inlined_call_operand.vmem [shape: f32[1,256], index: 2, kind: input, shape index: {}]
  %s3 = inlined_call_operand.hbm [shape: bf16[256,256], index: 3, kind: input, shape index: {}]
  %s4 = inlined_call_operand.vmem [shape: f32[1,256], index: 4, kind: input, shape index: {}]
  %s5 = inlined_call_operand.hbm [shape: bf16[256,256], index: 5, kind: input, shape index: {}]
  %s6 = inlined_call_operand.vmem [shape: f32[1,256], index: 6, kind: input, shape index: {}]
  %s7 = inlined_call_operand.vmem [shape: bf16[256,4], index: 7, kind: input, shape index: {}]
  %s8 = inlined_call_operand.vmem [shape: f32[1,4], index: 8, kind: input, shape index: {}]
  %s9 = inlined_call_operand.vmem [shape: f32[8,4], index: 9, kind: output, shape index: {}]
  %s10 = sld [smem:[#allocation0]]
  $region54: #{mlp_forward.1} parent=0
    _
  %s12 = ssub.s32 1, %s10
  %s13 = scalar_select 0, %s12, %s10
  $region1: #{mlp_forward.1} parent=0
    #allocation2 [shape = 'u8[131072]{0}', space=vmem, size = 0x20000, scoped, tag = 'input window, operand 3, single buffered']
    #allocation3 [shape = 's32[1]{0}', space=sflag, size = 0x4, scoped, tag = 'scoped memory for mlp_forward.1']
    #allocation4 [shape = 'u8[131072]{0}', space=vmem, size = 0x20000, scoped, tag = 'input window, operand 5, single buffered']
    #allocation5 [shape = 's32[1]{0}', space=sflag, size = 0x4, scoped, tag = 'scoped memory for mlp_forward.1']
    %14 = vsyncpa [#allocation3], 0
    %15 = vsyncpa [#allocation5], 0
    // Predicated region
    $region2: #{mlp_forward.1} parent=1 // pred_check
      _
    $region3: #{mlp_forward.1} parent=1 // pred_check_branch
      %17 = sbr.rel (0) target = $region5
    $region4: #{mlp_forward.1} parent=1 // pred_region
      _
    $region5: #{mlp_forward.1} parent=1 // pred_fallthru
      _
    // Predicated region
    $region6: #{mlp_forward.1} parent=1 // pred_check
      _
    $region7: #{mlp_forward.1} parent=1 // pred_check_branch
      %19 = sbr.rel (0) target = $region9
    $region8: #{mlp_forward.1} parent=1 // pred_region
      _
    $region9: #{mlp_forward.1} parent=1 // pred_fallthru
      _
    // Predicated region
    $region10: #{mlp_forward.1} parent=1 // pred_check
      _
    $region11: #{mlp_forward.1} parent=1 // pred_check_branch
      %21 = sbr.rel (0) target = $region13
    $region12: #{mlp_forward.1} parent=1 // pred_region
      _
    $region13: #{mlp_forward.1} parent=1 // pred_fallthru
      _
    // Predicated region
    $region14: #{mlp_forward.1} parent=1 // pred_check
      _
    $region15: #{mlp_forward.1} parent=1 // pred_check_branch
      %23 = sbr.rel (0) target = $region17
    $region16: #{mlp_forward.1} parent=1 // pred_region
      %25 = vsyncadd [#allocation3], 0
      %s26 = sshll.u32 %s3, 4
      %s27 = int_to_ptr.hbm [resolvable:$true] %s26
      %s28 = sshll.u32 [#allocation2], 4
      %s29 = int_to_ptr.vmem [resolvable:$true] %s28
      %34 = dma.hbm_to_vmem [thread:$0]  %s27, 4096, %s29, [#allocation3], 128, 128, 8
    $region17: #{mlp_forward.1} parent=1 // pred_fallthru
      _
    // Predicated region
    $region18: #{mlp_forward.1} parent=1 // pred_check
      _
    $region19: #{mlp_forward.1} parent=1 // pred_check_branch
      %36 = sbr.rel (0) target = $region21
    $region20: #{mlp_forward.1} parent=1 // pred_region
      _
    $region21: #{mlp_forward.1} parent=1 // pred_fallthru
      _
    // Predicated region
    $region22: #{mlp_forward.1} parent=1 // pred_check
      _
    $region23: #{mlp_forward.1} parent=1 // pred_check_branch
      %38 = sbr.rel (0) target = $region25
    $region24: #{mlp_forward.1} parent=1 // pred_region
      %40 = vsyncadd [#allocation5], 0
      %s41 = sshll.u32 %s5, 4
      %s42 = int_to_ptr.hbm [resolvable:$true] %s41
      %s43 = sshll.u32 [#allocation4], 4
      %s44 = int_to_ptr.vmem [resolvable:$true] %s43
      %49 = dma.hbm_to_vmem [thread:$0]  %s42, 4096, %s44, [#allocation5], 128, 128, 8
    $region25: #{mlp_forward.1} parent=1 // pred_fallthru
      _
    // Predicated region
    $region26: #{mlp_forward.1} parent=1 // pred_check
      _
    $region27: #{mlp_forward.1} parent=1 // pred_check_branch
      %51 = sbr.rel (0) target = $region29
    $region28: #{mlp_forward.1} parent=1 // pred_region
      _
    $region29: #{mlp_forward.1} parent=1 // pred_fallthru
      _
    // Predicated region
    $region30: #{mlp_forward.1} parent=1 // pred_check
      _
    $region31: #{mlp_forward.1} parent=1 // pred_check_branch
      %53 = sbr.rel (0) target = $region33
    $region32: #{mlp_forward.1} parent=1 // pred_region
      _
    $region33: #{mlp_forward.1} parent=1 // pred_fallthru
      _
    // Predicated region
    $region34: #{mlp_forward.1} parent=1 // pred_check
      _
    $region35: #{mlp_forward.1} parent=1 // pred_check_branch
      %55 = sbr.rel (0) target = $region37
    $region36: #{mlp_forward.1} parent=1 // pred_region
      _
    $region37: #{mlp_forward.1} parent=1 // pred_fallthru
      _
    // Predicated region
    $region38: #{mlp_forward.1} parent=1 // pred_check
      _
    $region39: #{mlp_forward.1} parent=1 // pred_check_branch
      %57 = sbr.rel (0) target = $region41
    $region40: #{mlp_forward.1} parent=1 // pred_region
      %59 = dma.done [#allocation3], 4096
    $region41: #{mlp_forward.1} parent=1 // pred_fallthru
      _
    // Predicated region
    $region42: #{mlp_forward.1} parent=1 // pred_check
      _
    $region43: #{mlp_forward.1} parent=1 // pred_check_branch
      %61 = sbr.rel (0) target = $region45
    $region44: #{mlp_forward.1} parent=1 // pred_region
      %63 = dma.done [#allocation5], 4096
    $region45: #{mlp_forward.1} parent=1 // pred_fallthru
      _
    %v65 = vld [vmem:[%s0] sm:$0xff]
    %v66 = vpack.c.bf16 %v65, %v65
    %v67 = vld [vmem:[%s1] sm:$0xff]
    %v68 = vld [vmem:[%s2] sm:$0x3]
    %v70 = vperm.slane %v68, 0
    %v71 = vperm.slane %v68, 1
    %v75 = vunpack.c.l.b16 %v67
    %v76 = vunpack.c.h.b16 %v67
    %v77 = vpack.c.b16 %v75, %v75
    %v78 = vpack.c.b16 %v76, %v76
    %vm79 = vcmask 64512
    %v81 = vsel %vm79, %v66, 0
    %vm83 = vcmask 1043456
    %v85 = vsel %vm83, %v77, 0
    %v88 = vsel %vm83, %v78, 0
    %90 = vmatpush.bf16.msra.mxu0 0
    %91 = vmatpush.bf16.msra.mxu0 0
    %92 = vmatpush.bf16.msra.mxu0 0
    %93 = vmatpush.bf16.msra.mxu0 0
    %94 = vmatpush.bf16.msra.mxu0 0
    %95 = vmatpush.bf16.msra.mxu0 0
    %96 = vmatpush.bf16.msra.mxu0 0
    %97 = vmatpush.bf16.msra.mxu0 %v85
    %98 = vmatmul.bf16.gmra.mxu0 %v81
    %v99 = vpop.f32.mrf.mxu0
    %v100 = vadd.f32 %v70, %v99
    %v101 = vpop.f32.mrf.mxu0
    %102 = vdwg.mxu0
    %103 = vmatpush.bf16.msra.mxu0 0
    %104 = vmatpush.bf16.msra.mxu0 0
    %105 = vmatpush.bf16.msra.mxu0 0
    %106 = vmatpush.bf16.msra.mxu0 0
    %107 = vmatpush.bf16.msra.mxu0 0
    %108 = vmatpush.bf16.msra.mxu0 0
    %109 = vmatpush.bf16.msra.mxu0 0
    %110 = vmatpush.bf16.msra.mxu0 %v88
    %111 = vmatmul.bf16.gmra.mxu0 %v81
    %v112 = vpop.f32.mrf.mxu0
    %v113 = vadd.f32 %v71, %v112
    %v114 = vpop.f32.mrf.mxu0
    %115 = vdwg.mxu0
    %v116 = vmax.f32 %v100, 0.0
    %v117 = vmax.f32 %v113, 0.0
    %v118 = vpack.c.bf16 %v116, %v116
    %v119 = vpack.c.bf16 %v117, %v117
    %v120 = vld [vmem:[#allocation2] sm:$0xff]
    %v121 = vld [vmem:[#allocation2 + $0x8] sm:$0xff]
    %v122 = vld [vmem:[#allocation2 + $0x10] sm:$0xff]
    %v123 = vld [vmem:[#allocation2 + $0x18] sm:$0xff]
    %v124 = vld [vmem:[#allocation2 + $0x20] sm:$0xff]
    %v125 = vld [vmem:[#allocation2 + $0x28] sm:$0xff]
    %v126 = vld [vmem:[#allocation2 + $0x30] sm:$0xff]
    %v127 = vld [vmem:[#allocation2 + $0x38] sm:$0xff]
    %v128 = vld [vmem:[#allocation2 + $0x40] sm:$0xff]
    %v129 = vld [vmem:[#allocation2 + $0x48] sm:$0xff]
    %v130 = vld [vmem:[#allocation2 + $0x50] sm:$0xff]
    %v131 = vld [vmem:[#allocation2 + $0x58] sm:$0xff]
    %v132 = vld [vmem:[#allocation2 + $0x60] sm:$0xff]
    %v133 = vld [vmem:[#allocation2 + $0x68] sm:$0xff]
    %v134 = vld [vmem:[#allocation2 + $0x70] sm:$0xff]
    %v135 = vld [vmem:[#allocation2 + $0x78] sm:$0xff]
    %v136 = vld [vmem:[#allocation2 + $0x80] sm:$0xff]
    %v137 = vld [vmem:[#allocation2 + $0x88] sm:$0xff]
    %v138 = vld [vmem:[#allocation2 + $0x90] sm:$0xff]
    %v139 = vld [vmem:[#allocation2 + $0x98] sm:$0xff]
    %v140 = vld [vmem:[#allocation2 + $0xa0] sm:$0xff]
    %v141 = vld [vmem:[#allocation2 + $0xa8] sm:$0xff]
    %v142 = vld [vmem:[#allocation2 + $0xb0] sm:$0xff]
    %v143 = vld [vmem:[#allocation2 + $0xb8] sm:$0xff]
    %v144 = vld [vmem:[#allocation2 + $0xc0] sm:$0xff]
    %v145 = vld [vmem:[#allocation2 + $0xc8] sm:$0xff]
    %v146 = vld [vmem:[#allocation2 + $0xd0] sm:$0xff]
    %v147 = vld [vmem:[#allocation2 + $0xd8] sm:$0xff]
    %v148 = vld [vmem:[#allocation2 + $0xe0] sm:$0xff]
    %v149 = vld [vmem:[#allocation2 + $0xe8] sm:$0xff]
    %v150 = vld [vmem:[#allocation2 + $0xf0] sm:$0xff]
    %v151 = vld [vmem:[#allocation2 + $0xf8] sm:$0xff]
    %v152 = vld [vmem:[%s4] sm:$0x3]
    %v154 = vperm.slane %v152, 0
    %v155 = vperm.slane %v152, 1
    %v190 = vunpack.c.l.b16 %v120
    %v191 = vunpack.c.h.b16 %v120
    %v192 = vunpack.c.l.b16 %v121
    %v193 = vunpack.c.h.b16 %v121
    %v194 = vunpack.c.l.b16 %v122
    %v195 = vunpack.c.h.b16 %v122
    %v196 = vunpack.c.l.b16 %v123
    %v197 = vunpack.c.h.b16 %v123
    %v198 = vunpack.c.l.b16 %v124
    %v199 = vunpack.c.h.b16 %v124
    %v200 = vunpack.c.l.b16 %v125
    %v201 = vunpack.c.h.b16 %v125
    %v202 = vunpack.c.l.b16 %v126
    %v203 = vunpack.c.h.b16 %v126
    %v204 = vunpack.c.l.b16 %v127
    %v205 = vunpack.c.h.b16 %v127
    %v206 = vunpack.c.l.b16 %v128
    %v207 = vunpack.c.h.b16 %v128
    %v208 = vunpack.c.l.b16 %v129
    %v209 = vunpack.c.h.b16 %v129
    %v210 = vunpack.c.l.b16 %v130
    %v211 = vunpack.c.h.b16 %v130
    %v212 = vunpack.c.l.b16 %v131
    %v213 = vunpack.c.h.b16 %v131
    %v214 = vunpack.c.l.b16 %v132
    %v215 = vunpack.c.h.b16 %v132
    %v216 = vunpack.c.l.b16 %v133
    %v217 = vunpack.c.h.b16 %v133
    %v218 = vunpack.c.l.b16 %v134
    %v219 = vunpack.c.h.b16 %v134
    %v220 = vunpack.c.l.b16 %v135
    %v221 = vunpack.c.h.b16 %v135
    %v222 = vunpack.c.l.b16 %v136
    %v223 = vunpack.c.h.b16 %v136
    %v224 = vunpack.c.l.b16 %v137
    %v225 = vunpack.c.h.b16 %v137
    %v226 = vunpack.c.l.b16 %v138
    %v227 = vunpack.c.h.b16 %v138
    %v228 = vunpack.c.l.b16 %v139
    %v229 = vunpack.c.h.b16 %v139
    %v230 = vunpack.c.l.b16 %v140
    %v231 = vunpack.c.h.b16 %v140
    %v232 = vunpack.c.l.b16 %v141
    %v233 = vunpack.c.h.b16 %v141
    %v234 = vunpack.c.l.b16 %v142
    %v235 = vunpack.c.h.b16 %v142
    %v236 = vunpack.c.l.b16 %v143
    %v237 = vunpack.c.h.b16 %v143
    %v238 = vunpack.c.l.b16 %v144
    %v239 = vunpack.c.h.b16 %v144
    %v240 = vunpack.c.l.b16 %v145
    %v241 = vunpack.c.h.b16 %v145
    %v242 = vunpack.c.l.b16 %v146
    %v243 = vunpack.c.h.b16 %v146
    %v244 = vunpack.c.l.b16 %v147
    %v245 = vunpack.c.h.b16 %v147
    %v246 = vunpack.c.l.b16 %v148
    %v247 = vunpack.c.h.b16 %v148
    %v248 = vunpack.c.l.b16 %v149
    %v249 = vunpack.c.h.b16 %v149
    %v250 = vunpack.c.l.b16 %v150
    %v251 = vunpack.c.h.b16 %v150
    %v252 = vunpack.c.l.b16 %v151
    %v253 = vunpack.c.h.b16 %v151
    %v254 = vpack.c.b16 %v192, %v190
    %v255 = vpack.c.b16 %v193, %v191
    %v256 = vpack.c.b16 %v196, %v194
    %v257 = vpack.c.b16 %v197, %v195
    %v258 = vpack.c.b16 %v200, %v198
    %v259 = vpack.c.b16 %v201, %v199
    %v260 = vpack.c.b16 %v204, %v202
    %v261 = vpack.c.b16 %v205, %v203
    %v262 = vpack.c.b16 %v208, %v206
    %v263 = vpack.c.b16 %v209, %v207
    %v264 = vpack.c.b16 %v212, %v210
    %v265 = vpack.c.b16 %v213, %v211
    %v266 = vpack.c.b16 %v216, %v214
    %v267 = vpack.c.b16 %v217, %v215
    %v268 = vpack.c.b16 %v220, %v218
    %v269 = vpack.c.b16 %v221, %v219
    %v270 = vpack.c.b16 %v224, %v222
    %v271 = vpack.c.b16 %v225, %v223
    %v272 = vpack.c.b16 %v228, %v226
    %v273 = vpack.c.b16 %v229, %v227
    %v274 = vpack.c.b16 %v232, %v230
    %v275 = vpack.c.b16 %v233, %v231
    %v276 = vpack.c.b16 %v236, %v234
    %v277 = vpack.c.b16 %v237, %v235
    %v278 = vpack.c.b16 %v240, %v238
    %v279 = vpack.c.b16 %v241, %v239
    %v280 = vpack.c.b16 %v244, %v242
    %v281 = vpack.c.b16 %v245, %v243
    %v282 = vpack.c.b16 %v248, %v246
    %v283 = vpack.c.b16 %v249, %v247
    %v284 = vpack.c.b16 %v252, %v250
    %v285 = vpack.c.b16 %v253, %v251
    %318 = vmatpush.bf16.msra.mxu0 %v268
    %319 = vmatpush.bf16.msra.mxu0 %v266
    %320 = vmatpush.bf16.msra.mxu0 %v264
    %321 = vmatpush.bf16.msra.mxu0 %v262
    %322 = vmatpush.bf16.msra.mxu0 %v260
    %323 = vmatpush.bf16.msra.mxu0 %v258
    %324 = vmatpush.bf16.msra.mxu0 %v256
    %325 = vmatpush.bf16.msra.mxu0 %v254
    %326 = vmatmul.bf16.gmra.mxu0 %v118
    %v327 = vpop.f32.mrf.mxu0
    %v328 = vadd.f32 %v154, %v327
    %v329 = vpop.f32.mrf.mxu0
    %330 = vdwg.mxu0
    %331 = vmatpush.bf16.msra.mxu0 %v284
    %332 = vmatpush.bf16.msra.mxu0 %v282
    %333 = vmatpush.bf16.msra.mxu0 %v280
    %334 = vmatpush.bf16.msra.mxu0 %v278
    %335 = vmatpush.bf16.msra.mxu0 %v276
    %336 = vmatpush.bf16.msra.mxu0 %v274
    %337 = vmatpush.bf16.msra.mxu0 %v272
    %338 = vmatpush.bf16.msra.mxu0 %v270
    %339 = vmatmul.bf16.gmra.mxu0 %v119
    %v340 = vpop.f32.mrf.mxu0
    %v341 = vadd.f32 %v328, %v340
    %v342 = vpop.f32.mrf.mxu0
    %343 = vdwg.mxu0
    %344 = vmatpush.bf16.msra.mxu0 %v269
    %345 = vmatpush.bf16.msra.mxu0 %v267
    %346 = vmatpush.bf16.msra.mxu0 %v265
    %347 = vmatpush.bf16.msra.mxu0 %v263
    %348 = vmatpush.bf16.msra.mxu0 %v261
    %349 = vmatpush.bf16.msra.mxu0 %v259
    %350 = vmatpush.bf16.msra.mxu0 %v257
    %351 = vmatpush.bf16.msra.mxu0 %v255
    %352 = vmatmul.bf16.gmra.mxu0 %v118
    %v353 = vpop.f32.mrf.mxu0
    %v354 = vadd.f32 %v155, %v353
    %v355 = vpop.f32.mrf.mxu0
    %356 = vdwg.mxu0
    %357 = vmatpush.bf16.msra.mxu0 %v285
    %358 = vmatpush.bf16.msra.mxu0 %v283
    %359 = vmatpush.bf16.msra.mxu0 %v281
    %360 = vmatpush.bf16.msra.mxu0 %v279
    %361 = vmatpush.bf16.msra.mxu0 %v277
    %362 = vmatpush.bf16.msra.mxu0 %v275
    %363 = vmatpush.bf16.msra.mxu0 %v273
    %364 = vmatpush.bf16.msra.mxu0 %v271
    %365 = vmatmul.bf16.gmra.mxu0 %v119
    %v366 = vpop.f32.mrf.mxu0
    %v367 = vadd.f32 %v354, %v366
    %v368 = vpop.f32.mrf.mxu0
    %369 = vdwg.mxu0
    %v370 = vmax.f32 %v341, 0.0
    %v371 = vmax.f32 %v367, 0.0
    %v372 = vpack.c.bf16 %v370, %v370
    %v373 = vpack.c.bf16 %v371, %v371
    %v374 = vld [vmem:[#allocation4] sm:$0xff]
    %v375 = vld [vmem:[#allocation4 + $0x8] sm:$0xff]
    %v376 = vld [vmem:[#allocation4 + $0x10] sm:$0xff]
    %v377 = vld [vmem:[#allocation4 + $0x18] sm:$0xff]
    %v378 = vld [vmem:[#allocation4 + $0x20] sm:$0xff]
    %v379 = vld [vmem:[#allocation4 + $0x28] sm:$0xff]
    %v380 = vld [vmem:[#allocation4 + $0x30] sm:$0xff]
    %v381 = vld [vmem:[#allocation4 + $0x38] sm:$0xff]
    %v382 = vld [vmem:[#allocation4 + $0x40] sm:$0xff]
    %v383 = vld [vmem:[#allocation4 + $0x48] sm:$0xff]
    %v384 = vld [vmem:[#allocation4 + $0x50] sm:$0xff]
    %v385 = vld [vmem:[#allocation4 + $0x58] sm:$0xff]
    %v386 = vld [vmem:[#allocation4 + $0x60] sm:$0xff]
    %v387 = vld [vmem:[#allocation4 + $0x68] sm:$0xff]
    %v388 = vld [vmem:[#allocation4 + $0x70] sm:$0xff]
    %v389 = vld [vmem:[#allocation4 + $0x78] sm:$0xff]
    %v390 = vld [vmem:[#allocation4 + $0x80] sm:$0xff]
    %v391 = vld [vmem:[#allocation4 + $0x88] sm:$0xff]
    %v392 = vld [vmem:[#allocation4 + $0x90] sm:$0xff]
    %v393 = vld [vmem:[#allocation4 + $0x98] sm:$0xff]
    %v394 = vld [vmem:[#allocation4 + $0xa0] sm:$0xff]
    %v395 = vld [vmem:[#allocation4 + $0xa8] sm:$0xff]
    %v396 = vld [vmem:[#allocation4 + $0xb0] sm:$0xff]
    %v397 = vld [vmem:[#allocation4 + $0xb8] sm:$0xff]
    %v398 = vld [vmem:[#allocation4 + $0xc0] sm:$0xff]
    %v399 = vld [vmem:[#allocation4 + $0xc8] sm:$0xff]
    %v400 = vld [vmem:[#allocation4 + $0xd0] sm:$0xff]
    %v401 = vld [vmem:[#allocation4 + $0xd8] sm:$0xff]
    %v402 = vld [vmem:[#allocation4 + $0xe0] sm:$0xff]
    %v403 = vld [vmem:[#allocation4 + $0xe8] sm:$0xff]
    %v404 = vld [vmem:[#allocation4 + $0xf0] sm:$0xff]
    %v405 = vld [vmem:[#allocation4 + $0xf8] sm:$0xff]
    %v406 = vld [vmem:[%s6] sm:$0x3]
    %v408 = vperm.slane %v406, 0
    %v409 = vperm.slane %v406, 1
    %v444 = vunpack.c.l.b16 %v374
    %v445 = vunpack.c.h.b16 %v374
    %v446 = vunpack.c.l.b16 %v375
    %v447 = vunpack.c.h.b16 %v375
    %v448 = vunpack.c.l.b16 %v376
    %v449 = vunpack.c.h.b16 %v376
    %v450 = vunpack.c.l.b16 %v377
    %v451 = vunpack.c.h.b16 %v377
    %v452 = vunpack.c.l.b16 %v378
    %v453 = vunpack.c.h.b16 %v378
    %v454 = vunpack.c.l.b16 %v379
    %v455 = vunpack.c.h.b16 %v379
    %v456 = vunpack.c.l.b16 %v380
    %v457 = vunpack.c.h.b16 %v380
    %v458 = vunpack.c.l.b16 %v381
    %v459 = vunpack.c.h.b16 %v381
    %v460 = vunpack.c.l.b16 %v382
    %v461 = vunpack.c.h.b16 %v382
    %v462 = vunpack.c.l.b16 %v383
    %v463 = vunpack.c.h.b16 %v383
    %v464 = vunpack.c.l.b16 %v384
    %v465 = vunpack.c.h.b16 %v384
    %v466 = vunpack.c.l.b16 %v385
    %v467 = vunpack.c.h.b16 %v385
    %v468 = vunpack.c.l.b16 %v386
    %v469 = vunpack.c.h.b16 %v386
    %v470 = vunpack.c.l.b16 %v387
    %v471 = vunpack.c.h.b16 %v387
    %v472 = vunpack.c.l.b16 %v388
    %v473 = vunpack.c.h.b16 %v388
    %v474 = vunpack.c.l.b16 %v389
    %v475 = vunpack.c.h.b16 %v389
    %v476 = vunpack.c.l.b16 %v390
    %v477 = vunpack.c.h.b16 %v390
    %v478 = vunpack.c.l.b16 %v391
    %v479 = vunpack.c.h.b16 %v391
    %v480 = vunpack.c.l.b16 %v392
    %v481 = vunpack.c.h.b16 %v392
    %v482 = vunpack.c.l.b16 %v393
    %v483 = vunpack.c.h.b16 %v393
    %v484 = vunpack.c.l.b16 %v394
    %v485 = vunpack.c.h.b16 %v394
    %v486 = vunpack.c.l.b16 %v395
    %v487 = vunpack.c.h.b16 %v395
    %v488 = vunpack.c.l.b16 %v396
    %v489 = vunpack.c.h.b16 %v396
    %v490 = vunpack.c.l.b16 %v397
    %v491 = vunpack.c.h.b16 %v397
    %v492 = vunpack.c.l.b16 %v398
    %v493 = vunpack.c.h.b16 %v398
    %v494 = vunpack.c.l.b16 %v399
    %v495 = vunpack.c.h.b16 %v399
    %v496 = vunpack.c.l.b16 %v400
    %v497 = vunpack.c.h.b16 %v400
    %v498 = vunpack.c.l.b16 %v401
    %v499 = vunpack.c.h.b16 %v401
    %v500 = vunpack.c.l.b16 %v402
    %v501 = vunpack.c.h.b16 %v402
    %v502 = vunpack.c.l.b16 %v403
    %v503 = vunpack.c.h.b16 %v403
    %v504 = vunpack.c.l.b16 %v404
    %v505 = vunpack.c.h.b16 %v404
    %v506 = vunpack.c.l.b16 %v405
    %v507 = vunpack.c.h.b16 %v405
    %v508 = vpack.c.b16 %v446, %v444
    %v509 = vpack.c.b16 %v447, %v445
    %v510 = vpack.c.b16 %v450, %v448
    %v511 = vpack.c.b16 %v451, %v449
    %v512 = vpack.c.b16 %v454, %v452
    %v513 = vpack.c.b16 %v455, %v453
    %v514 = vpack.c.b16 %v458, %v456
    %v515 = vpack.c.b16 %v459, %v457
    %v516 = vpack.c.b16 %v462, %v460
    %v517 = vpack.c.b16 %v463, %v461
    %v518 = vpack.c.b16 %v466, %v464
    %v519 = vpack.c.b16 %v467, %v465
    %v520 = vpack.c.b16 %v470, %v468
    %v521 = vpack.c.b16 %v471, %v469
    %v522 = vpack.c.b16 %v474, %v472
    %v523 = vpack.c.b16 %v475, %v473
    %v524 = vpack.c.b16 %v478, %v476
    %v525 = vpack.c.b16 %v479, %v477
    %v526 = vpack.c.b16 %v482, %v480
    %v527 = vpack.c.b16 %v483, %v481
    %v528 = vpack.c.b16 %v486, %v484
    %v529 = vpack.c.b16 %v487, %v485
    %v530 = vpack.c.b16 %v490, %v488
    %v531 = vpack.c.b16 %v491, %v489
    %v532 = vpack.c.b16 %v494, %v492
    %v533 = vpack.c.b16 %v495, %v493
    %v534 = vpack.c.b16 %v498, %v496
    %v535 = vpack.c.b16 %v499, %v497
    %v536 = vpack.c.b16 %v502, %v500
    %v537 = vpack.c.b16 %v503, %v501
    %v538 = vpack.c.b16 %v506, %v504
    %v539 = vpack.c.b16 %v507, %v505
    %572 = vmatpush.bf16.msra.mxu0 %v522
    %573 = vmatpush.bf16.msra.mxu0 %v520
    %574 = vmatpush.bf16.msra.mxu0 %v518
    %575 = vmatpush.bf16.msra.mxu0 %v516
    %576 = vmatpush.bf16.msra.mxu0 %v514
    %577 = vmatpush.bf16.msra.mxu0 %v512
    %578 = vmatpush.bf16.msra.mxu0 %v510
    %579 = vmatpush.bf16.msra.mxu0 %v508
    %580 = vmatmul.bf16.gmra.mxu0 %v372
    %v581 = vpop.f32.mrf.mxu0
    %v582 = vadd.f32 %v408, %v581
    %v583 = vpop.f32.mrf.mxu0
    %584 = vdwg.mxu0
    %585 = vmatpush.bf16.msra.mxu0 %v538
    %586 = vmatpush.bf16.msra.mxu0 %v536
    %587 = vmatpush.bf16.msra.mxu0 %v534
    %588 = vmatpush.bf16.msra.mxu0 %v532
    %589 = vmatpush.bf16.msra.mxu0 %v530
    %590 = vmatpush.bf16.msra.mxu0 %v528
    %591 = vmatpush.bf16.msra.mxu0 %v526
    %592 = vmatpush.bf16.msra.mxu0 %v524
    %593 = vmatmul.bf16.gmra.mxu0 %v373
    %v594 = vpop.f32.mrf.mxu0
    %v595 = vadd.f32 %v582, %v594
    %v596 = vpop.f32.mrf.mxu0
    %597 = vdwg.mxu0
    %598 = vmatpush.bf16.msra.mxu0 %v523
    %599 = vmatpush.bf16.msra.mxu0 %v521
    %600 = vmatpush.bf16.msra.mxu0 %v519
    %601 = vmatpush.bf16.msra.mxu0 %v517
    %602 = vmatpush.bf16.msra.mxu0 %v515
    %603 = vmatpush.bf16.msra.mxu0 %v513
    %604 = vmatpush.bf16.msra.mxu0 %v511
    %605 = vmatpush.bf16.msra.mxu0 %v509
    %606 = vmatmul.bf16.gmra.mxu0 %v372
    %v607 = vpop.f32.mrf.mxu0
    %v608 = vadd.f32 %v409, %v607
    %v609 = vpop.f32.mrf.mxu0
    %610 = vdwg.mxu0
    %611 = vmatpush.bf16.msra.mxu0 %v539
    %612 = vmatpush.bf16.msra.mxu0 %v537
    %613 = vmatpush.bf16.msra.mxu0 %v535
    %614 = vmatpush.bf16.msra.mxu0 %v533
    %615 = vmatpush.bf16.msra.mxu0 %v531
    %616 = vmatpush.bf16.msra.mxu0 %v529
    %617 = vmatpush.bf16.msra.mxu0 %v527
    %618 = vmatpush.bf16.msra.mxu0 %v525
    %619 = vmatmul.bf16.gmra.mxu0 %v373
    %v620 = vpop.f32.mrf.mxu0
    %v621 = vadd.f32 %v608, %v620
    %v622 = vpop.f32.mrf.mxu0
    %623 = vdwg.mxu0
    %v624 = vmax.f32 %v595, 0.0
    %v625 = vmax.f32 %v621, 0.0
    %v626 = vpack.c.bf16 %v624, %v624
    %v627 = vpack.c.bf16 %v625, %v625
    %v628 = vld [vmem:[%s7] sm:$0xf]
    %v629 = vld [vmem:[%s7 + $0x4] sm:$0xf]
    %v630 = vld [vmem:[%s7 + $0x8] sm:$0xf]
    %v631 = vld [vmem:[%s7 + $0xc] sm:$0xf]
    %v632 = vld [vmem:[%s7 + $0x10] sm:$0xf]
    %v633 = vld [vmem:[%s7 + $0x14] sm:$0xf]
    %v634 = vld [vmem:[%s7 + $0x18] sm:$0xf]
    %v635 = vld [vmem:[%s7 + $0x1c] sm:$0xf]
    %v636 = vld [vmem:[%s7 + $0x20] sm:$0xf]
    %v637 = vld [vmem:[%s7 + $0x24] sm:$0xf]
    %v638 = vld [vmem:[%s7 + $0x28] sm:$0xf]
    %v639 = vld [vmem:[%s7 + $0x2c] sm:$0xf]
    %v640 = vld [vmem:[%s7 + $0x30] sm:$0xf]
    %v641 = vld [vmem:[%s7 + $0x34] sm:$0xf]
    %v642 = vld [vmem:[%s7 + $0x38] sm:$0xf]
    %v643 = vld [vmem:[%s7 + $0x3c] sm:$0xf]
    %v644 = vld [vmem:[%s7 + $0x40] sm:$0xf]
    %v645 = vld [vmem:[%s7 + $0x44] sm:$0xf]
    %v646 = vld [vmem:[%s7 + $0x48] sm:$0xf]
    %v647 = vld [vmem:[%s7 + $0x4c] sm:$0xf]
    %v648 = vld [vmem:[%s7 + $0x50] sm:$0xf]
    %v649 = vld [vmem:[%s7 + $0x54] sm:$0xf]
    %v650 = vld [vmem:[%s7 + $0x58] sm:$0xf]
    %v651 = vld [vmem:[%s7 + $0x5c] sm:$0xf]
    %v652 = vld [vmem:[%s7 + $0x60] sm:$0xf]
    %v653 = vld [vmem:[%s7 + $0x64] sm:$0xf]
    %v654 = vld [vmem:[%s7 + $0x68] sm:$0xf]
    %v655 = vld [vmem:[%s7 + $0x6c] sm:$0xf]
    %v656 = vld [vmem:[%s7 + $0x70] sm:$0xf]
    %v657 = vld [vmem:[%s7 + $0x74] sm:$0xf]
    %v658 = vld [vmem:[%s7 + $0x78] sm:$0xf]
    %v659 = vld [vmem:[%s7 + $0x7c] sm:$0xf]
    %v660 = vld [vmem:[%s8] sm:$0x1]
    %v662 = vperm.slane %v660, 0
    %v696 = vunpack.c.l.b16 %v628
    %v697 = vunpack.c.l.b16 %v629
    %v698 = vunpack.c.l.b16 %v630
    %v699 = vunpack.c.l.b16 %v631
    %v700 = vunpack.c.l.b16 %v632
    %v701 = vunpack.c.l.b16 %v633
    %v702 = vunpack.c.l.b16 %v634
    %v703 = vunpack.c.l.b16 %v635
    %v704 = vunpack.c.l.b16 %v636
    %v705 = vunpack.c.l.b16 %v637
    %v706 = vunpack.c.l.b16 %v638
    %v707 = vunpack.c.l.b16 %v639
    %v708 = vunpack.c.l.b16 %v640
    %v709 = vunpack.c.l.b16 %v641
    %v710 = vunpack.c.l.b16 %v642
    %v711 = vunpack.c.l.b16 %v643
    %v712 = vunpack.c.l.b16 %v644
    %v713 = vunpack.c.l.b16 %v645
    %v714 = vunpack.c.l.b16 %v646
    %v715 = vunpack.c.l.b16 %v647
    %v716 = vunpack.c.l.b16 %v648
    %v717 = vunpack.c.l.b16 %v649
    %v718 = vunpack.c.l.b16 %v650
    %v719 = vunpack.c.l.b16 %v651
    %v720 = vunpack.c.l.b16 %v652
    %v721 = vunpack.c.l.b16 %v653
    %v722 = vunpack.c.l.b16 %v654
    %v723 = vunpack.c.l.b16 %v655
    %v724 = vunpack.c.l.b16 %v656
    %v725 = vunpack.c.l.b16 %v657
    %v726 = vunpack.c.l.b16 %v658
    %v727 = vunpack.c.l.b16 %v659
    %v728 = vpack.c.b16 %v697, %v696
    %v729 = vpack.c.b16 %v699, %v698
    %v730 = vpack.c.b16 %v701, %v700
    %v731 = vpack.c.b16 %v703, %v702
    %v732 = vpack.c.b16 %v705, %v704
    %v733 = vpack.c.b16 %v707, %v706
    %v734 = vpack.c.b16 %v709, %v708
    %v735 = vpack.c.b16 %v711, %v710
    %v736 = vpack.c.b16 %v713, %v712
    %v737 = vpack.c.b16 %v715, %v714
    %v738 = vpack.c.b16 %v717, %v716
    %v739 = vpack.c.b16 %v719, %v718
    %v740 = vpack.c.b16 %v721, %v720
    %v741 = vpack.c.b16 %v723, %v722
    %v742 = vpack.c.b16 %v725, %v724
    %v743 = vpack.c.b16 %v727, %v726
    %760 = vmatpush.bf16.msra.mxu0 %v735
    %761 = vmatpush.bf16.msra.mxu0 %v734
    %762 = vmatpush.bf16.msra.mxu0 %v733
    %763 = vmatpush.bf16.msra.mxu0 %v732
    %764 = vmatpush.bf16.msra.mxu0 %v731
    %765 = vmatpush.bf16.msra.mxu0 %v730
    %766 = vmatpush.bf16.msra.mxu0 %v729
    %767 = vmatpush.bf16.msra.mxu0 %v728
    %768 = vmatmul.bf16.gmra.mxu0 %v626
    %v769 = vpop.f32.mrf.mxu0
    %v770 = vadd.f32 %v662, %v769
    %v771 = vpop.f32.mrf.mxu0
    %772 = vdwg.mxu0
    %773 = vmatpush.bf16.msra.mxu0 %v743
    %774 = vmatpush.bf16.msra.mxu0 %v742
    %775 = vmatpush.bf16.msra.mxu0 %v741
    %776 = vmatpush.bf16.msra.mxu0 %v740
    %777 = vmatpush.bf16.msra.mxu0 %v739
    %778 = vmatpush.bf16.msra.mxu0 %v738
    %779 = vmatpush.bf16.msra.mxu0 %v737
    %780 = vmatpush.bf16.msra.mxu0 %v736
    %781 = vmatmul.bf16.gmra.mxu0 %v627
    %v782 = vpop.f32.mrf.mxu0
    %v783 = vadd.f32 %v770, %v782
    %v784 = vpop.f32.mrf.mxu0
    %785 = vdwg.mxu0
    %vm786 = vcmask 31744
    %787 = vst.msk [vmem:[%s9] sm:$0xff] %vm786, %v783
    // Predicated region
    $region46: #{mlp_forward.1} parent=1 // pred_check
      _
    $region47: #{mlp_forward.1} parent=1 // pred_check_branch
      %789 = sbr.rel (0) target = $region49
    $region48: #{mlp_forward.1} parent=1 // pred_region
      _
    $region49: #{mlp_forward.1} parent=1 // pred_fallthru
      _
    // Predicated region
    $region50: #{mlp_forward.1} parent=1 // pred_check
      _
    $region51: #{mlp_forward.1} parent=1 // pred_check_branch
      %791 = sbr.rel (0) target = $region53
    $region52: #{mlp_forward.1} parent=1 // pred_region
      _
    $region53: #{mlp_forward.1} parent=1 // pred_fallthru
      _
    %792 = vsyncpa [#allocation3], 1
    %793 = vsyncpa [#allocation5], 1

</llo_original>
